<compile_context>
chip_gen: v6e
topology: v6e:2x2x1
jax: 0.10.0
libtpu: 0.0.40
codegen_flags: <defaults>
</compile_context>

<pallas_src>
import jax
import jax.numpy as jnp
from jax.experimental import pallas as pl
from jax.experimental.pallas import tpu as pltpu


def _simple_loss_kernel(packed_ref, out_ref):
    # packed: (4, B), lane-dense (batch on the 128-wide lane axis).
    #   row 0: predictions[:, 0]   row 2: target_theta[:, -1]
    #   row 1: predictions[:, 1]   row 3: target_phi[:, -1]
    packed = packed_ref[...].astype(jnp.float32)     # single cast on the tile

    b = packed.shape[1]
    inv_b = 1.0 / b  # static Python constant (true batch size), folded at trace time

    diff = packed[0:2, :] - packed[2:4, :]            # (2, B) — one VPU chain
    sq = diff * diff                                  # (2, B)
    s = jnp.sum(sq, axis=1, keepdims=True)            # (2, 1) — one XLU reduction

    theta_loss = s[0, 0] * inv_b                      # F.mse_loss default: mean
    phi_loss = s[1, 0] * inv_b
    total_loss = theta_loss + phi_loss

    out_ref[0] = total_loss
    out_ref[1] = theta_loss
    out_ref[2] = phi_loss


def simple_loss(predictions, targets):
    """predictions: (B, 2); targets: (target_theta (B, S), target_phi (B, S)).

    Returns (total_loss, theta_loss, phi_loss) as float32 scalars.
    """
    target_theta, target_phi = targets

    # Wrapper-side layout plumbing (one small XLA fusion, one output buffer):
    #  - slice last timestep so the kernel never sees the (B, S) arrays,
    #  - pack pred_theta / pred_phi / theta_last / phi_last into one
    #    lane-dense (4, B) array -> a single HBM->VMEM DMA in the kernel.
    packed = jnp.concatenate(
        [
            predictions.T,                    # (2, B)
            target_theta[:, -1][None, :],     # (1, B)
            target_phi[:, -1][None, :],       # (1, B)
        ],
        axis=0,
    )                                         # (4, B)

    losses = pl.pallas_call(
        _simple_loss_kernel,
        out_shape=jax.ShapeDtypeStruct((3,), jnp.float32),
        in_specs=[pl.BlockSpec(memory_space=pltpu.MemorySpace.VMEM)],
        out_specs=pl.BlockSpec(memory_space=pltpu.MemorySpace.SMEM),
    )(packed)
    return losses[0], losses[1], losses[2]


if __name__ == "__main__":
    key = jax.random.PRNGKey(0)
    k1, k2, k3 = jax.random.split(key, 3)

    B, S = 8, 16
    predictions = jax.random.normal(k1, (B, 2), dtype=jnp.float32)
    target_theta = jax.random.normal(k2, (B, S), dtype=jnp.float32)
    target_phi = jax.random.normal(k3, (B, S), dtype=jnp.float32)

    total_loss, theta_loss, phi_loss = simple_loss(
        predictions, (target_theta, target_phi)
    )
    jax.block_until_ready((total_loss, theta_loss, phi_loss))

    # Reference check in plain JAX (same semantics as the PyTorch module).
    ref_theta = jnp.mean((predictions[:, 0] - target_theta[:, -1]) ** 2)
    ref_phi = jnp.mean((predictions[:, 1] - target_phi[:, -1]) ** 2)
    ref_total = ref_theta + ref_phi
    assert jnp.allclose(theta_loss, ref_theta, atol=1e-5)
    assert jnp.allclose(phi_loss, ref_phi, atol=1e-5)
    assert jnp.allclose(total_loss, ref_total, atol=1e-5)

    print("KERNEL_OK")
</pallas_src>

<mosaic_0001>
module attributes {stable_mosaic.version = 11 : i64} {
  func.func @_simple_loss_kernel(%arg0: memref<4x8xf32, #tpu.memory_space<vmem>>, %arg1: memref<3xf32, #tpu.memory_space<smem>>) attributes {dimension_semantics = [], scalar_prefetch = 0 : i64, scratch_operands = 0 : i64, tpu.core_type = #tpu.core_type<tc>} {
    %c0 = arith.constant 0 : index
    %c0_0 = arith.constant 0 : index
    %0 = vector.load %arg0[%c0, %c0_0] : memref<4x8xf32, #tpu.memory_space<vmem>>, vector<4x8xf32>
    %1 = vector.extract_strided_slice %0 {offsets = [0, 0], sizes = [2, 8], strides = [1, 1]} : vector<4x8xf32> to vector<2x8xf32>
    %2 = vector.extract_strided_slice %0 {offsets = [2, 0], sizes = [2, 8], strides = [1, 1]} : vector<4x8xf32> to vector<2x8xf32>
    %3 = arith.subf %1, %2 : vector<2x8xf32>
    %4 = arith.mulf %3, %3 : vector<2x8xf32>
    %cst = arith.constant dense<0.000000e+00> : vector<2xf32>
    %5 = vector.multi_reduction <add>, %4, %cst [1] : vector<2x8xf32> to vector<2xf32>
    %6 = vector.shape_cast %5 : vector<2xf32> to vector<2x1xf32>
    %7 = vector.extract_strided_slice %6 {offsets = [0, 0], sizes = [1, 1], strides = [1, 1]} : vector<2x1xf32> to vector<1x1xf32>
    %8 = vector.extract %7[0, 0] : f32 from vector<1x1xf32>
    %cst_1 = arith.constant 1.250000e-01 : f32
    %9 = arith.mulf %8, %cst_1 : f32
    %10 = vector.extract_strided_slice %6 {offsets = [1, 0], sizes = [1, 1], strides = [1, 1]} : vector<2x1xf32> to vector<1x1xf32>
    %11 = vector.extract %10[0, 0] : f32 from vector<1x1xf32>
    %cst_2 = arith.constant 1.250000e-01 : f32
    %12 = arith.mulf %11, %cst_2 : f32
    %13 = arith.addf %9, %12 : f32
    %c0_3 = arith.constant 0 : index
    %14 = memref.load %arg1[%c0_3] : memref<3xf32, #tpu.memory_space<smem>>
    memref.store %13, %arg1[%c0_3] : memref<3xf32, #tpu.memory_space<smem>>
    %c1 = arith.constant 1 : index
    %15 = memref.load %arg1[%c1] : memref<3xf32, #tpu.memory_space<smem>>
    memref.store %9, %arg1[%c1] : memref<3xf32, #tpu.memory_space<smem>>
    %c2 = arith.constant 2 : index
    %16 = memref.load %arg1[%c2] : memref<3xf32, #tpu.memory_space<smem>>
    memref.store %12, %arg1[%c2] : memref<3xf32, #tpu.memory_space<smem>>
    return
  }
}

</mosaic_0001>

<llo_original>
// kernel: tpu_custom_call.1
$region0: #{tpu_custom_call.1}
  #allocation0 [shape = 'u32[]', space=smem, size = 0x4, offset = 0x4, fixed_abs, tag = 'smem constant byte address 0x4 - core index']
  #allocation1 [shape = 'u32[144,128]{1,0:T(1,128)}', space=vmem, size = 0x12000, scoped, tag = 'internal scratch']
  %s0 = inlined_call_operand.hbm [shape: f32[4,8], index: 0, kind: input, shape index: {}]
  %s1 = inlined_call_operand.hbm [shape: f32[3], index: 1, kind: output, shape index: {}]
  %s2 = sld [smem:[#allocation0]]
  $region18: #{tpu_custom_call.1} parent=0
    _
  %s4 = ssub.s32 1, %s2
  %s5 = scalar_select 0, %s4, %s2
  $region1: #{tpu_custom_call.1} parent=0
    #allocation2 [shape = 'u8[2048]{0}', space=vmem, size = 0x800, scoped, tag = 'input window, operand 0, single buffered']
    #allocation3 [shape = 's32[1]{0}', space=sflag, size = 0x4, scoped, tag = 'scoped memory for tpu_custom_call.1']
    #allocation4 [shape = 's32[1]{0}', space=sflag, size = 0x4, scoped, tag = 'scoped memory for tpu_custom_call.1']
    #allocation5 [shape = 'u8[512]{0}', space=smem, size = 0x200, scoped, tag = 'output window, operand 0, single buffered']
    %6 = vsyncpa [#allocation3], 0
    %7 = vsyncpa [#allocation4], 0
    // Predicated region
    $region2: #{tpu_custom_call.1} parent=1 // pred_check
      _
    $region3: #{tpu_custom_call.1} parent=1 // pred_check_branch
      %9 = sbr.rel (0) target = $region5
    $region4: #{tpu_custom_call.1} parent=1 // pred_region
      %s11 = ssub.s32 64, 64
      %12 = vsyncadd [#allocation3], %s11
      %s14 = sshll.u32 [#allocation2], 4
      %s15 = int_to_ptr.vmem [resolvable:$true] %s14
      %17 = dma.hbm_to_vmem [thread:$0]  %s0, 64, %s15, [#allocation3]
    $region5: #{tpu_custom_call.1} parent=1 // pred_fallthru
      _
    // Predicated region
    $region6: #{tpu_custom_call.1} parent=1 // pred_check
      _
    $region7: #{tpu_custom_call.1} parent=1 // pred_check_branch
      %19 = sbr.rel (0) target = $region9
    $region8: #{tpu_custom_call.1} parent=1 // pred_region
      %20 = dma.done [#allocation3], 64
    $region9: #{tpu_custom_call.1} parent=1 // pred_fallthru
      _
    %v21 = vld [vmem:[#allocation2] sm:$0xf]
    %v23 = vrot.slane %v21, 2
    %v25 = vsub.f32 %v21, %v23
    %v26 = vmul.f32 %v25, %v25
    %vm27 = vcmask 58368
    %v28 = vsel %vm27, %v26, 0.0
    %29 = vadd.xlane.f32.xlu0 %v28
    %v30 = vpop.xlane.xlu0 %29
    %s31 = vtos %v30
    %s32 = smul.f32 %s31, 0.125
    %v33 = vrot.slane %v30, 1
    %s34 = vtos %v33
    %s35 = smul.f32 %s34, 0.125
    %s36 = sadd.f32 %s32, %s35
    %s37 = scalar_lea.smem [#allocation5], 0
    %38 = sst [smem:[%s37]] %s36
    %s39 = scalar_lea.smem [#allocation5], 1
    %40 = sst [smem:[%s39]] %s32
    %s41 = scalar_lea.smem [#allocation5], 2
    %42 = sst [smem:[%s41]] %s35
    // Predicated region
    $region10: #{tpu_custom_call.1} parent=1 // pred_check
      _
    $region11: #{tpu_custom_call.1} parent=1 // pred_check_branch
      %44 = sbr.rel (0) target = $region13
    $region12: #{tpu_custom_call.1} parent=1 // pred_region
      %s46 = ssub.s32 16, 16
      %47 = vsyncadd [#allocation4], %s46
      %50 = dma.smem_to_hbm [#allocation5], 16, %s1, [#allocation4]
    $region13: #{tpu_custom_call.1} parent=1 // pred_fallthru
      _
    // Predicated region
    $region14: #{tpu_custom_call.1} parent=1 // pred_check
      _
    $region15: #{tpu_custom_call.1} parent=1 // pred_check_branch
      %52 = sbr.rel (0) target = $region17
    $region16: #{tpu_custom_call.1} parent=1 // pred_region
      %53 = dma.done [#allocation4], 16
    $region17: #{tpu_custom_call.1} parent=1 // pred_fallthru
      _
    %54 = sfence
    %55 = vsyncpa [#allocation3], 1
    %56 = vsyncpa [#allocation4], 1

</llo_original>
